<compile_context>
chip_gen: v7x
topology: tpu7x:2x2x1
jax: 0.10.0
libtpu: 0.0.40
codegen_flags: <defaults>
</compile_context>

<pallas_src>
import jax
import jax.numpy as jnp
from jax import lax
from jax.experimental import pallas as pl
from jax.experimental.pallas import tpu as pltpu


def _round_up(x, m):
    return (x + m - 1) // m * m


def _make_cln_kernel(eps, d_real, d_pad, fused_l2):
    pad_cols = d_pad - d_real          # zero-padded feature columns
    inv_n = 1.0 / d_real
    inv_nm1 = 1.0 / max(d_real - 1, 1)

    def kernel(x_ref, mem_ref, w1_ref, b1_ref, w2_ref, b2_ref,
               gamma_ref, beta_ref, o_ref):
        x = x_ref[...].astype(jnp.float32)            # (tm, Dp) f32
        mem = mem_ref[...]                            # (tm, Mp) f32 or bf16

        # Fused first layer of BOTH MLPs on the MXU: (tm, Mp) @ (Mp, 2*Dp).
        h = jnp.dot(mem, w1_ref[...], preferred_element_type=jnp.float32)
        h = jnp.maximum(h + b1_ref[...], 0.0)         # bias + ReLU in f32
        h = h.astype(w2_ref.dtype)                    # bf16 feed when MLPs are bf16

        b2 = b2_ref[...]                              # (1, 2*Dp) f32
        if fused_l2:
            # Block-diagonal second layer: one (tm,2Dp)@(2Dp,2Dp) matmul fills
            # the 256-wide MXU when Dp == 128.
            delta = jnp.dot(h, w2_ref[...],
                            preferred_element_type=jnp.float32) + b2
            dgamma = delta[:, :d_pad]
            dbeta = delta[:, d_pad:]
        else:
            dgamma = jnp.dot(h[:, :d_pad], w2_ref[:d_pad, :],
                             preferred_element_type=jnp.float32) + b2[:, :d_pad]
            dbeta = jnp.dot(h[:, d_pad:], w2_ref[d_pad:, :],
                            preferred_element_type=jnp.float32) + b2[:, d_pad:]

        # Layer statistics over the REAL feature width only.  Padded x columns
        # are exactly zero, so each contributes mean^2 to sum(xc^2); subtract
        # that analytically instead of building an iota/where mask.
        mean = jnp.sum(x, axis=-1, keepdims=True) * inv_n
        xc = x - mean
        ss = jnp.sum(xc * xc, axis=-1, keepdims=True)
        if pad_cols:
            ss = ss - float(pad_cols) * (mean * mean)
        var = jnp.maximum(ss, 0.0) * inv_nm1          # unbiased (N-1), clamp fp dust
        inv = pl.reciprocal(jnp.sqrt(var) + eps, approx=False)   # exact, per-row

        gamma_hat = gamma_ref[...] + dgamma
        beta_hat = beta_ref[...] + dbeta
        o_ref[...] = (gamma_hat * (xc * inv) + beta_hat).astype(o_ref.dtype)

    return kernel


def _vmem_budget():
    """Generation-aware (budget, vmem_limit_bytes) in bytes."""
    try:
        cap = int(pltpu.get_tpu_info().vmem_capacity_bytes)
    except Exception:                       # pragma: no cover - conservative fallback
        cap = 64 * 1024 * 1024
    budget = int(cap * 0.65)                # tile-chooser target
    limit = min(int(cap * 0.80), cap - (2 << 20))
    return budget, max(limit, budget)


def conditional_layer_norm(x, memory1, params, *, eps=1e-6, tm=1024,
                           mlp_dtype=jnp.float32):
    """Fused ConditionalLayerNorm forward.

    x:        (B, S, d_model) float32
    memory1:  (B, S, rm_num_slots * rm_d_model) float32
    mlp_dtype: dtype fed to the MXU for the two MLPs (f32 or bf16); statistics,
               affine and output math always stay f32.
    """
    B, S, D = x.shape
    M = memory1.shape[-1]
    rows = B * S
    assert D >= 2, "unbiased std divides by (d_model - 1)"

    Dp = _round_up(D, 128)                  # lane-dense feature width
    Mp = _round_up(M, 128)                  # lane-dense memory width
    fused_l2 = (Dp == 128)                  # fill the 256-wide MXU on v6e/v7x
    w2_cols = 2 * Dp if fused_l2 else Dp
    mlp_bytes = jnp.dtype(mlp_dtype).itemsize

    # ---- choose the row tile under the chip's VMEM budget -------------------
    budget, vmem_limit = _vmem_budget()
    # Weights/biases are single-buffered (constant index map + Buffered(1)).
    weight_bytes = mlp_bytes * (Mp * 2 * Dp + 2 * Dp * w2_cols) + 4 * 6 * Dp

    def _vmem_need(t):
        io = 2 * t * (4 * 2 * Dp + mlp_bytes * Mp)   # x, out, mem (double-buffered)
        tmp = 4 * t * (Mp + 10 * Dp)                 # h, deltas, xc, casts, ...
        return weight_bytes + io + tmp

    tm_eff = min(_round_up(max(tm, 8), 8), _round_up(rows, 8))
    if rows >= 16:                           # keep >=2 grid steps (v7x: 2 TCs)
        tm_eff = min(tm_eff, _round_up(pl.cdiv(rows, 2), 8))
    while tm_eff > 8 and _vmem_need(tm_eff) > budget:
        tm_eff = max(8, _round_up(tm_eff // 2, 8))
    rows_pad = _round_up(rows, tm_eff)

    # ---- activations: pad only when the padded shape actually differs -------
    x2 = x.reshape(rows, D)
    m2 = memory1.reshape(rows, M).astype(mlp_dtype)
    if Dp != D or rows_pad != rows:
        x2 = jnp.zeros((rows_pad, Dp), x.dtype).at[:rows, :D].set(x2)
    if Mp != M or rows_pad != rows:
        m2 = jnp.zeros((rows_pad, Mp), m2.dtype).at[:rows, :M].set(m2)

    # ---- pack / pad the parameters ------------------------------------------
    f32 = jnp.float32
    w1 = (jnp.zeros((Mp, 2 * Dp), f32)
          .at[:M, :D].set(params["w1g"])
          .at[:M, Dp:Dp + D].set(params["w1b"])).astype(mlp_dtype)
    b1 = (jnp.zeros((1, 2 * Dp), f32)
          .at[0, :D].set(params["b1g"])
          .at[0, Dp:Dp + D].set(params["b1b"]))
    if fused_l2:
        w2 = (jnp.zeros((2 * Dp, 2 * Dp), f32)
              .at[:D, :D].set(params["w2g"])
              .at[Dp:Dp + D, Dp:Dp + D].set(params["w2b"])).astype(mlp_dtype)
    else:
        w2 = (jnp.zeros((2 * Dp, Dp), f32)
              .at[:D, :D].set(params["w2g"])
              .at[Dp:Dp + D, :D].set(params["w2b"])).astype(mlp_dtype)
    b2 = (jnp.zeros((1, 2 * Dp), f32)
          .at[0, :D].set(params["b2g"])
          .at[0, Dp:Dp + D].set(params["b2b"]))
    gamma = jnp.zeros((1, Dp), f32).at[0, :D].set(params["gamma"])
    beta = jnp.zeros((1, Dp), f32).at[0, :D].set(params["beta"])

    def const_spec(shape):
        n = len(shape)
        idx = lambda i: (0,) * n
        try:   # constant index map -> DMA'd once; single buffer halves VMEM use
            return pl.BlockSpec(shape, idx, pipeline_mode=pl.Buffered(1))
        except TypeError:
            return pl.BlockSpec(shape, idx)

    cost = pl.CostEstimate(
        flops=int(rows_pad * (2 * Mp * 2 * Dp + 2 * 2 * Dp * w2_cols + 12 * Dp)),
        transcendentals=int(rows_pad),
        bytes_accessed=int(rows_pad * (mlp_bytes * Mp + 4 * 2 * Dp)
                           + mlp_bytes * (Mp * 2 * Dp + 2 * Dp * w2_cols)
                           + 4 * 6 * Dp),
    )

    out = pl.pallas_call(
        _make_cln_kernel(eps, D, Dp, fused_l2),
        out_shape=jax.ShapeDtypeStruct((rows_pad, Dp), x.dtype),
        grid=(rows_pad // tm_eff,),
        in_specs=[
            pl.BlockSpec((tm_eff, Dp), lambda i: (i, 0)),       # x rows
            pl.BlockSpec((tm_eff, Mp), lambda i: (i, 0)),       # memory rows
            const_spec((Mp, 2 * Dp)), const_spec((1, 2 * Dp)),  # fused layer-1 W, b
            const_spec((2 * Dp, w2_cols)), const_spec((1, 2 * Dp)),  # layer-2 W, b
            const_spec((1, Dp)), const_spec((1, Dp)),           # gamma, beta
        ],
        out_specs=pl.BlockSpec((tm_eff, Dp), lambda i: (i, 0)),
        compiler_params=pltpu.CompilerParams(
            dimension_semantics=("parallel",),
            vmem_limit_bytes=int(vmem_limit),
        ),
        cost_estimate=cost,
    )(x2, m2, w1, b1, w2, b2, gamma, beta)

    if Dp != D or rows_pad != rows:
        out = out[:rows, :D]
    return out.reshape(B, S, D)


def _xavier_uniform(key, fan_in, fan_out):
    bound = (6.0 / (fan_in + fan_out)) ** 0.5
    # stored as (in, out) so the kernel can do x @ W (== x @ W_torch.T)
    return jax.random.uniform(key, (fan_in, fan_out), jnp.float32, -bound, bound)


def init_params(key, d_model, rm_num_slots, rm_d_model):
    assert d_model == rm_d_model, "module only type-checks when d_model == rm_d_model"
    M = rm_num_slots * rm_d_model
    k1, k2, k3, k4 = jax.random.split(key, 4)
    bias = lambda n: jnp.full((n,), 0.1, jnp.float32)   # nn.init.constant_(bias, 0.1)
    return {
        "gamma": jnp.ones((d_model,), jnp.float32),
        "beta": jnp.zeros((d_model,), jnp.float32),
        "w1g": _xavier_uniform(k1, M, d_model), "b1g": bias(d_model),
        "w2g": _xavier_uniform(k2, d_model, d_model), "b2g": bias(d_model),
        "w1b": _xavier_uniform(k3, M, d_model), "b1b": bias(d_model),
        "w2b": _xavier_uniform(k4, d_model, d_model), "b2b": bias(d_model),
    }


def _reference(x, memory1, params, eps=1e-6):
    """Pure-JAX reference mirroring the PyTorch forward (highest-precision dots)."""
    hp = lax.Precision.HIGHEST
    mean = jnp.mean(x, axis=-1, keepdims=True)
    xc = x - mean
    std = jnp.sqrt(jnp.sum(xc * xc, axis=-1, keepdims=True) / (x.shape[-1] - 1))

    def mlp(w1, b1, w2, b2):
        h = jnp.maximum(jnp.dot(memory1, w1, precision=hp) + b1, 0.0)
        return jnp.dot(h, w2, precision=hp) + b2

    dg = mlp(params["w1g"], params["b1g"], params["w2g"], params["b2g"])
    db = mlp(params["w1b"], params["b1b"], params["w2b"], params["b2b"])
    return (params["gamma"] + dg) * xc / (std + eps) + (params["beta"] + db)


if __name__ == "__main__":
    d_model = 32
    rm_num_slots = 4
    rm_d_model = 32          # must equal d_model (see note above)
    B, S = 2, 8
    M = rm_num_slots * rm_d_model

    key = jax.random.PRNGKey(0)
    kx, km, kp = jax.random.split(key, 3)
    x = jax.random.normal(kx, (B, S, d_model), jnp.float32)
    memory1 = jax.random.normal(km, (B, S, M), jnp.float32)
    params = init_params(kp, d_model, rm_num_slots, rm_d_model)

    ref = _reference(x, memory1, params)

    # f32 MLP path: matches the reference to f32-matmul precision.
    out = jax.block_until_ready(conditional_layer_norm(x, memory1, params))
    assert out.shape == (B, S, d_model)
    assert jnp.allclose(out, ref, atol=1e-3, rtol=1e-3), "f32 kernel mismatch"

    # bf16 MLP path (MXU-rate matmuls, f32 accumulation) -- looser numeric bar.
    out_bf16 = jax.block_until_ready(
        conditional_layer_norm(x, memory1, params, mlp_dtype=jnp.bfloat16))
    assert out_bf16.shape == (B, S, d_model)
    assert jnp.allclose(out_bf16, ref, atol=1.5e-1, rtol=5e-2), "bf16 kernel mismatch"

    print("KERNEL_OK")
</pallas_src>

<mosaic_0001>
module attributes {stable_mosaic.version = 11 : i64} {
  func.func @kernel(%arg0: i32, %arg1: memref<8x128xf32, #tpu.memory_space<vmem>>, %arg2: memref<8x128xf32, #tpu.memory_space<vmem>>, %arg3: memref<128x256xf32, #tpu.memory_space<vmem>>, %arg4: memref<1x256xf32, #tpu.memory_space<vmem>>, %arg5: memref<256x256xf32, #tpu.memory_space<vmem>>, %arg6: memref<1x256xf32, #tpu.memory_space<vmem>>, %arg7: memref<1x128xf32, #tpu.memory_space<vmem>>, %arg8: memref<1x128xf32, #tpu.memory_space<vmem>>, %arg9: memref<8x128xf32, #tpu.memory_space<vmem>>) attributes {dimension_semantics = [#tpu.dimension_semantics<parallel>], iteration_bounds = array<i64: 2>, scalar_prefetch = 0 : i64, scratch_operands = 0 : i64, tpu.core_type = #tpu.core_type<tc>, window_params = [{transform_indices = @transform_0, window_bounds = array<i64: 8, 128>}, {transform_indices = @transform_1, window_bounds = array<i64: 8, 128>}, {pipeline_mode = #tpu.pipeline_mode<synchronous>, transform_indices = @transform_2, window_bounds = array<i64: 128, 256>}, {pipeline_mode = #tpu.pipeline_mode<synchronous>, transform_indices = @transform_3, window_bounds = array<i64: 1, 256>}, {pipeline_mode = #tpu.pipeline_mode<synchronous>, transform_indices = @transform_4, window_bounds = array<i64: 256, 256>}, {pipeline_mode = #tpu.pipeline_mode<synchronous>, transform_indices = @transform_5, window_bounds = array<i64: 1, 256>}, {pipeline_mode = #tpu.pipeline_mode<synchronous>, transform_indices = @transform_6, window_bounds = array<i64: 1, 128>}, {pipeline_mode = #tpu.pipeline_mode<synchronous>, transform_indices = @transform_7, window_bounds = array<i64: 1, 128>}, {transform_indices = @transform_8, window_bounds = array<i64: 8, 128>}]} {
    %c0 = arith.constant 0 : index
    %c0_0 = arith.constant 0 : index
    %0 = vector.load %arg1[%c0, %c0_0] : memref<8x128xf32, #tpu.memory_space<vmem>>, vector<8x128xf32>
    %c0_1 = arith.constant 0 : index
    %c0_2 = arith.constant 0 : index
    %1 = vector.load %arg2[%c0_1, %c0_2] : memref<8x128xf32, #tpu.memory_space<vmem>>, vector<8x128xf32>
    %c0_3 = arith.constant 0 : index
    %c0_4 = arith.constant 0 : index
    %2 = vector.load %arg3[%c0_3, %c0_4] : memref<128x256xf32, #tpu.memory_space<vmem>>, vector<128x256xf32>
    %cst = arith.constant dense<0.000000e+00> : vector<8x256xf32>
    %3 = tpu.matmul %1, %2, %cst {dimension_numbers = #tpu.dot_dimension_numbers<[1], [0], [0], [1], [0, 0, 1, 1], [], []>} : vector<8x128xf32>, vector<128x256xf32>, vector<8x256xf32> -> vector<8x256xf32>
    %c0_5 = arith.constant 0 : index
    %c0_6 = arith.constant 0 : index
    %4 = vector.load %arg4[%c0_5, %c0_6] : memref<1x256xf32, #tpu.memory_space<vmem>>, vector<1x256xf32>
    %5 = vector.broadcast %4 : vector<1x256xf32> to vector<8x256xf32>
    %6 = arith.addf %3, %5 : vector<8x256xf32>
    %cst_7 = arith.constant 0.000000e+00 : f32
    %7 = vector.broadcast %cst_7 : f32 to vector<8x256xf32>
    %8 = arith.maximumf %6, %7 : vector<8x256xf32>
    %c0_8 = arith.constant 0 : index
    %c0_9 = arith.constant 0 : index
    %9 = vector.load %arg6[%c0_8, %c0_9] : memref<1x256xf32, #tpu.memory_space<vmem>>, vector<1x256xf32>
    %c0_10 = arith.constant 0 : index
    %c0_11 = arith.constant 0 : index
    %10 = vector.load %arg5[%c0_10, %c0_11] : memref<256x256xf32, #tpu.memory_space<vmem>>, vector<256x256xf32>
    %cst_12 = arith.constant dense<0.000000e+00> : vector<8x256xf32>
    %11 = tpu.matmul %8, %10, %cst_12 {dimension_numbers = #tpu.dot_dimension_numbers<[1], [0], [0], [1], [0, 0, 1, 1], [], []>} : vector<8x256xf32>, vector<256x256xf32>, vector<8x256xf32> -> vector<8x256xf32>
    %12 = vector.broadcast %9 : vector<1x256xf32> to vector<8x256xf32>
    %13 = arith.addf %11, %12 : vector<8x256xf32>
    %14 = vector.extract_strided_slice %13 {offsets = [0, 0], sizes = [8, 128], strides = [1, 1]} : vector<8x256xf32> to vector<8x128xf32>
    %15 = vector.extract_strided_slice %13 {offsets = [0, 128], sizes = [8, 128], strides = [1, 1]} : vector<8x256xf32> to vector<8x128xf32>
    %cst_13 = arith.constant dense<0.000000e+00> : vector<8xf32>
    %16 = vector.multi_reduction <add>, %0, %cst_13 [1] : vector<8x128xf32> to vector<8xf32>
    %17 = vector.shape_cast %16 : vector<8xf32> to vector<8x1xf32>
    %cst_14 = arith.constant 3.125000e-02 : f32
    %18 = vector.broadcast %cst_14 : f32 to vector<8x1xf32>
    %19 = arith.mulf %17, %18 : vector<8x1xf32>
    %20 = vector.broadcast %19 : vector<8x1xf32> to vector<8x128xf32>
    %21 = arith.subf %0, %20 : vector<8x128xf32>
    %22 = arith.mulf %21, %21 : vector<8x128xf32>
    %cst_15 = arith.constant dense<0.000000e+00> : vector<8xf32>
    %23 = vector.multi_reduction <add>, %22, %cst_15 [1] : vector<8x128xf32> to vector<8xf32>
    %24 = vector.shape_cast %23 : vector<8xf32> to vector<8x1xf32>
    %25 = arith.mulf %19, %19 : vector<8x1xf32>
    %cst_16 = arith.constant 9.600000e+01 : f32
    %26 = vector.broadcast %cst_16 : f32 to vector<8x1xf32>
    %27 = arith.mulf %26, %25 : vector<8x1xf32>
    %28 = arith.subf %24, %27 : vector<8x1xf32>
    %cst_17 = arith.constant 0.000000e+00 : f32
    %29 = vector.broadcast %cst_17 : f32 to vector<8x1xf32>
    %30 = arith.maximumf %28, %29 : vector<8x1xf32>
    %cst_18 = arith.constant 0.0322580636 : f32
    %31 = vector.broadcast %cst_18 : f32 to vector<8x1xf32>
    %32 = arith.mulf %30, %31 : vector<8x1xf32>
    %33 = math.sqrt %32 : vector<8x1xf32>
    %cst_19 = arith.constant 9.99999997E-7 : f32
    %34 = vector.broadcast %cst_19 : f32 to vector<8x1xf32>
    %35 = arith.addf %33, %34 : vector<8x1xf32>
    %36 = tpu.reciprocal %35 : vector<8x1xf32> -> vector<8x1xf32>
    %c0_20 = arith.constant 0 : index
    %c0_21 = arith.constant 0 : index
    %37 = vector.load %arg7[%c0_20, %c0_21] : memref<1x128xf32, #tpu.memory_space<vmem>>, vector<1x128xf32>
    %38 = vector.broadcast %37 : vector<1x128xf32> to vector<8x128xf32>
    %39 = arith.addf %38, %14 : vector<8x128xf32>
    %c0_22 = arith.constant 0 : index
    %c0_23 = arith.constant 0 : index
    %40 = vector.load %arg8[%c0_22, %c0_23] : memref<1x128xf32, #tpu.memory_space<vmem>>, vector<1x128xf32>
    %41 = vector.broadcast %40 : vector<1x128xf32> to vector<8x128xf32>
    %42 = arith.addf %41, %15 : vector<8x128xf32>
    %43 = vector.broadcast %36 : vector<8x1xf32> to vector<8x128xf32>
    %44 = arith.mulf %21, %43 : vector<8x128xf32>
    %45 = arith.mulf %39, %44 : vector<8x128xf32>
    %46 = arith.addf %45, %42 : vector<8x128xf32>
    %c0_24 = arith.constant 0 : index
    %c0_25 = arith.constant 0 : index
    %47 = vector.load %arg9[%c0_24, %c0_25] : memref<8x128xf32, #tpu.memory_space<vmem>>, vector<8x128xf32>
    tpu.vector_store %arg9[%c0_24, %c0_25], %46 {strides = array<i32>} : memref<8x128xf32, #tpu.memory_space<vmem>>, vector<8x128xf32>,
    return
  }
  func.func @transform_0(%arg0: i32) -> (i32, i32) {
    %c0_i32 = arith.constant 0 : i32
    %c0_i32_0 = arith.constant 0 : i32
    return %arg0, %c0_i32 : i32, i32
  }
  func.func @transform_1(%arg0: i32) -> (i32, i32) {
    %c0_i32 = arith.constant 0 : i32
    %c0_i32_0 = arith.constant 0 : i32
    return %arg0, %c0_i32 : i32, i32
  }
  func.func @transform_2(%arg0: i32) -> (i32, i32) {
    %c0_i32 = arith.constant 0 : i32
    %c0_i32_0 = arith.constant 0 : i32
    %c0_i32_1 = arith.constant 0 : i32
    return %c0_i32, %c0_i32_0 : i32, i32
  }
  func.func @transform_3(%arg0: i32) -> (i32, i32) {
    %c0_i32 = arith.constant 0 : i32
    %c0_i32_0 = arith.constant 0 : i32
    %c0_i32_1 = arith.constant 0 : i32
    return %c0_i32, %c0_i32_0 : i32, i32
  }
  func.func @transform_4(%arg0: i32) -> (i32, i32) {
    %c0_i32 = arith.constant 0 : i32
    %c0_i32_0 = arith.constant 0 : i32
    %c0_i32_1 = arith.constant 0 : i32
    return %c0_i32, %c0_i32_0 : i32, i32
  }
  func.func @transform_5(%arg0: i32) -> (i32, i32) {
    %c0_i32 = arith.constant 0 : i32
    %c0_i32_0 = arith.constant 0 : i32
    %c0_i32_1 = arith.constant 0 : i32
    return %c0_i32, %c0_i32_0 : i32, i32
  }
  func.func @transform_6(%arg0: i32) -> (i32, i32) {
    %c0_i32 = arith.constant 0 : i32
    %c0_i32_0 = arith.constant 0 : i32
    %c0_i32_1 = arith.constant 0 : i32
    return %c0_i32, %c0_i32_0 : i32, i32
  }
  func.func @transform_7(%arg0: i32) -> (i32, i32) {
    %c0_i32 = arith.constant 0 : i32
    %c0_i32_0 = arith.constant 0 : i32
    %c0_i32_1 = arith.constant 0 : i32
    return %c0_i32, %c0_i32_0 : i32, i32
  }
  func.func @transform_8(%arg0: i32) -> (i32, i32) {
    %c0_i32 = arith.constant 0 : i32
    %c0_i32_0 = arith.constant 0 : i32
    return %arg0, %c0_i32 : i32, i32
  }
}

</mosaic_0001>

<llo_original>
// kernel: tpu_custom_call.1
$region0: #{tpu_custom_call.1}
  #allocation0 [shape = 'u32[]', space=smem, size = 0x4, offset = 0x4, fixed_abs, tag = 'smem constant byte address 0x4 - core index']
  #allocation1 [shape = 'u32[144,128]{1,0:T(1,128)}', space=vmem, size = 0x12000, scoped, tag = 'internal scratch']
  %s0 = inlined_call_operand.hbm [shape: f32[16,128], index: 0, kind: input, shape index: {}]
  %s1 = inlined_call_operand.hbm [shape: f32[16,128], index: 1, kind: input, shape index: {}]
  %s2 = inlined_call_operand.hbm [shape: f32[128,256], index: 2, kind: input, shape index: {}]
  %s3 = inlined_call_operand.vmem [shape: f32[1,256], index: 3, kind: input, shape index: {}]
  %s4 = inlined_call_operand.hbm [shape: f32[256,256], index: 4, kind: input, shape index: {}]
  %s5 = inlined_call_operand.vmem [shape: f32[1,256], index: 5, kind: input, shape index: {}]
  %s6 = inlined_call_operand.vmem [shape: f32[1,128], index: 6, kind: input, shape index: {}]
  %s7 = inlined_call_operand.vmem [shape: f32[1,128], index: 7, kind: input, shape index: {}]
  %s8 = inlined_call_operand.hbm [shape: f32[16,128], index: 8, kind: output, shape index: {}]
  %s9 = sld [smem:[#allocation0]]
  $region81: #{tpu_custom_call.1} parent=0
    _
  %s11 = ssub.s32 1, %s9
  %s12 = scalar_select 0, %s11, %s9
  $region1: #{tpu_custom_call.1} parent=0
    #allocation2 [shape = 'u8[8192]{0}', space=vmem, size = 0x2000, scoped, tag = 'input window, operand 0']
    #allocation3 [shape = 's32[2]{0}', space=sflag, size = 0x8, scoped, tag = 'scoped memory for tpu_custom_call.1']
    #allocation4 [shape = 's32[2]{0}', space=sflag, size = 0x8, scoped, tag = 'scoped memory for tpu_custom_call.1']
    #allocation5 [shape = 'u8[8192]{0}', space=vmem, size = 0x2000, scoped, tag = 'input window, operand 1']
    #allocation6 [shape = 's32[2]{0}', space=sflag, size = 0x8, scoped, tag = 'scoped memory for tpu_custom_call.1']
    #allocation7 [shape = 'u8[131072]{0}', space=vmem, size = 0x20000, scoped, tag = 'input window, operand 2, single buffered']
    #allocation8 [shape = 'u8[262144]{0}', space=vmem, size = 0x40000, scoped, tag = 'input window, operand 4, single buffered']
    #allocation9 [shape = 's32[1]{0}', space=sflag, size = 0x4, scoped, tag = 'scoped memory for tpu_custom_call.1']
    #allocation10 [shape = 'u8[8192]{0}', space=vmem, size = 0x2000, scoped, tag = 'output window, operand 0']
    %13 = vsyncpa [#allocation3], 0
    %s14 = scalar_lea.sflag [#allocation3], 1
    %15 = vsyncpa %s14, 0
    %16 = vsyncpa [#allocation6], 0
    %s17 = scalar_lea.sflag [#allocation6], 1
    %18 = vsyncpa %s17, 0
    %19 = vsyncpa [#allocation9], 0
    %20 = vsyncpa [#allocation4], 0
    %s21 = scalar_lea.sflag [#allocation4], 1
    %22 = vsyncpa %s21, 0
    loop: start=0, step=1, limit=4
    $region2: #{tpu_custom_call.1} parent=1 // loop_pre_header
      _
    $region3: #{tpu_custom_call.1} parent=1 // loop_header
      %s24 = sphi 0, %s28
      %p25 = scmp.ge.s32.totalorder %s24, 4
      %s34 = sphi 0, %s36
      %s37 = sphi 0, %s34
      %s38 = sphi 0, %s37
      %s54 = sphi 0, %s38
      %s60 = sphi 0, %s62
      %s63 = sphi 0, %s60
      %s64 = sphi 0, %s63
      %s80 = sphi 0, %s64
      %s84 = sphi 0, %s84
      %s86 = sphi 0, %s84
      %s87 = sphi 0, %s86
      %s101 = sphi 0, %s87
      %s105 = sphi 0, %s105
      %s107 = sphi 0, %s105
      %s108 = sphi 0, %s107
      %s122 = sphi 0, %s108
      %s126 = sphi 0, %s126
      %s128 = sphi 0, %s126
      %s129 = sphi 0, %s128
      %s143 = sphi 0, %s129
      %s147 = sphi 0, %s147
      %s149 = sphi 0, %s147
      %s150 = sphi 0, %s149
      %s164 = sphi 0, %s150
      %s168 = sphi 0, %s168
      %s170 = sphi 0, %s168
      %s171 = sphi 0, %s170
      %s185 = sphi 0, %s171
      %s189 = sphi 0, %s189
      %s191 = sphi 0, %s189
      %s192 = sphi 0, %s191
      %s206 = sphi 0, %s192
      %s212 = sphi 0, %s214
      %s215 = sphi 0, %s212
      %s216 = sphi 0, %s215
      %s232 = sphi 0, %s216
    $region4: #{tpu_custom_call.1} parent=1 // loop_header_branch
      %27 = sbr.rel (%p25) target = $region8
    $region5: #{tpu_custom_call.1} parent=1 // loop_body
      %s29 = ssub.s32 %s24, 1
      %s30 = ssub.s32 %s24, 2
      %s31 = sadd.s32 %s24, 1
      %s32 = ssub.s32 %s24, %s31
      %p33 = scmp.eq.s32.totalorder %s32, 0
      %s35 = sadd.s32 %s34, 1
      %s36 = scalar_select %p33, %s34, %s35
      %p39 = pneg %p33
      %p40 = scmp.eq.s32.totalorder %s24, 1
      %p41 = por %p39, %p40
      %p42 = scmp.ne.s32.totalorder %s34, %s37
      %p43 = scmp.eq.s32.totalorder %s24, 0
      %p44 = por %p42, %p43
      %p45 = scmp.ne.s32.totalorder %s34, %s37
      %p46 = scmp.eq.s32.totalorder %s29, 1
      %p47 = por %p45, %p46
      %p48 = scmp.ne.s32.totalorder %s37, %s38
      %p49 = scmp.eq.s32.totalorder %s29, 0
      %p50 = por %p48, %p49
      %p51 = scmp.ne.s32.totalorder %s37, %s38
      %p52 = scmp.eq.s32.totalorder %s30, 1
      %p53 = por %p51, %p52
      %p55 = scmp.ne.s32.totalorder %s38, %s54
      %p56 = scmp.eq.s32.totalorder %s30, 0
      %p57 = por %p55, %p56
      %s58 = ssub.s32 %s24, %s31
      %p59 = scmp.eq.s32.totalorder %s58, 0
      %s61 = sadd.s32 %s60, 1
      %s62 = scalar_select %p59, %s60, %s61
      %p65 = pneg %p59
      %p66 = scmp.eq.s32.totalorder %s24, 1
      %p67 = por %p65, %p66
      %p68 = scmp.ne.s32.totalorder %s60, %s63
      %p69 = scmp.eq.s32.totalorder %s24, 0
      %p70 = por %p68, %p69
      %p71 = scmp.ne.s32.totalorder %s60, %s63
      %p72 = scmp.eq.s32.totalorder %s29, 1
      %p73 = por %p71, %p72
      %p74 = scmp.ne.s32.totalorder %s63, %s64
      %p75 = scmp.eq.s32.totalorder %s29, 0
      %p76 = por %p74, %p75
      %p77 = scmp.ne.s32.totalorder %s63, %s64
      %p78 = scmp.eq.s32.totalorder %s30, 1
      %p79 = por %p77, %p78
      %p81 = scmp.ne.s32.totalorder %s64, %s80
      %p82 = scmp.eq.s32.totalorder %s30, 0
      %p83 = por %p81, %p82
      %s85 = sadd.s32 %s84, 1
      %p88 = scmp.eq.s32.totalorder %s24, 1
      %p89 = scmp.ne.s32.totalorder %s84, %s86
      %p90 = scmp.eq.s32.totalorder %s24, 0
      %p91 = por %p89, %p90
      %p92 = scmp.ne.s32.totalorder %s84, %s86
      %p93 = scmp.eq.s32.totalorder %s29, 1
      %p94 = por %p92, %p93
      %p95 = scmp.ne.s32.totalorder %s86, %s87
      %p96 = scmp.eq.s32.totalorder %s29, 0
      %p97 = por %p95, %p96
      %p98 = scmp.ne.s32.totalorder %s86, %s87
      %p99 = scmp.eq.s32.totalorder %s30, 1
      %p100 = por %p98, %p99
      %p102 = scmp.ne.s32.totalorder %s87, %s101
      %p103 = scmp.eq.s32.totalorder %s30, 0
      %p104 = por %p102, %p103
      %s106 = sadd.s32 %s105, 1
      %p109 = scmp.eq.s32.totalorder %s24, 1
      %p110 = scmp.ne.s32.totalorder %s105, %s107
      %p111 = scmp.eq.s32.totalorder %s24, 0
      %p112 = por %p110, %p111
      %p113 = scmp.ne.s32.totalorder %s105, %s107
      %p114 = scmp.eq.s32.totalorder %s29, 1
      %p115 = por %p113, %p114
      %p116 = scmp.ne.s32.totalorder %s107, %s108
      %p117 = scmp.eq.s32.totalorder %s29, 0
      %p118 = por %p116, %p117
      %p119 = scmp.ne.s32.totalorder %s107, %s108
      %p120 = scmp.eq.s32.totalorder %s30, 1
      %p121 = por %p119, %p120
      %p123 = scmp.ne.s32.totalorder %s108, %s122
      %p124 = scmp.eq.s32.totalorder %s30, 0
      %p125 = por %p123, %p124
      %s127 = sadd.s32 %s126, 1
      %p130 = scmp.eq.s32.totalorder %s24, 1
      %p131 = scmp.ne.s32.totalorder %s126, %s128
      %p132 = scmp.eq.s32.totalorder %s24, 0
      %p133 = por %p131, %p132
      %p134 = scmp.ne.s32.totalorder %s126, %s128
      %p135 = scmp.eq.s32.totalorder %s29, 1
      %p136 = por %p134, %p135
      %p137 = scmp.ne.s32.totalorder %s128, %s129
      %p138 = scmp.eq.s32.totalorder %s29, 0
      %p139 = por %p137, %p138
      %p140 = scmp.ne.s32.totalorder %s128, %s129
      %p141 = scmp.eq.s32.totalorder %s30, 1
      %p142 = por %p140, %p141
      %p144 = scmp.ne.s32.totalorder %s129, %s143
      %p145 = scmp.eq.s32.totalorder %s30, 0
      %p146 = por %p144, %p145
      %s148 = sadd.s32 %s147, 1
      %p151 = scmp.eq.s32.totalorder %s24, 1
      %p152 = scmp.ne.s32.totalorder %s147, %s149
      %p153 = scmp.eq.s32.totalorder %s24, 0
      %p154 = por %p152, %p153
      %p155 = scmp.ne.s32.totalorder %s147, %s149
      %p156 = scmp.eq.s32.totalorder %s29, 1
      %p157 = por %p155, %p156
      %p158 = scmp.ne.s32.totalorder %s149, %s150
      %p159 = scmp.eq.s32.totalorder %s29, 0
      %p160 = por %p158, %p159
      %p161 = scmp.ne.s32.totalorder %s149, %s150
      %p162 = scmp.eq.s32.totalorder %s30, 1
      %p163 = por %p161, %p162
      %p165 = scmp.ne.s32.totalorder %s150, %s164
      %p166 = scmp.eq.s32.totalorder %s30, 0
      %p167 = por %p165, %p166
      %s169 = sadd.s32 %s168, 1
      %p172 = scmp.eq.s32.totalorder %s24, 1
      %p173 = scmp.ne.s32.totalorder %s168, %s170
      %p174 = scmp.eq.s32.totalorder %s24, 0
      %p175 = por %p173, %p174
      %p176 = scmp.ne.s32.totalorder %s168, %s170
      %p177 = scmp.eq.s32.totalorder %s29, 1
      %p178 = por %p176, %p177
      %p179 = scmp.ne.s32.totalorder %s170, %s171
      %p180 = scmp.eq.s32.totalorder %s29, 0
      %p181 = por %p179, %p180
      %p182 = scmp.ne.s32.totalorder %s170, %s171
      %p183 = scmp.eq.s32.totalorder %s30, 1
      %p184 = por %p182, %p183
      %p186 = scmp.ne.s32.totalorder %s171, %s185
      %p187 = scmp.eq.s32.totalorder %s30, 0
      %p188 = por %p186, %p187
      %s190 = sadd.s32 %s189, 1
      %p193 = scmp.eq.s32.totalorder %s24, 1
      %p194 = scmp.ne.s32.totalorder %s189, %s191
      %p195 = scmp.eq.s32.totalorder %s24, 0
      %p196 = por %p194, %p195
      %p197 = scmp.ne.s32.totalorder %s189, %s191
      %p198 = scmp.eq.s32.totalorder %s29, 1
      %p199 = por %p197, %p198
      %p200 = scmp.ne.s32.totalorder %s191, %s192
      %p201 = scmp.eq.s32.totalorder %s29, 0
      %p202 = por %p200, %p201
      %p203 = scmp.ne.s32.totalorder %s191, %s192
      %p204 = scmp.eq.s32.totalorder %s30, 1
      %p205 = por %p203, %p204
      %p207 = scmp.ne.s32.totalorder %s192, %s206
      %p208 = scmp.eq.s32.totalorder %s30, 0
      %p209 = por %p207, %p208
      %s210 = ssub.s32 %s24, %s31
      %p211 = scmp.eq.s32.totalorder %s210, 0
      %s213 = sadd.s32 %s212, 1
      %s214 = scalar_select %p211, %s212, %s213
      %p217 = pneg %p211
      %p218 = scmp.eq.s32.totalorder %s24, 1
      %p219 = por %p217, %p218
      %p220 = scmp.ne.s32.totalorder %s212, %s215
      %p221 = scmp.eq.s32.totalorder %s24, 0
      %p222 = por %p220, %p221
      %p223 = scmp.ne.s32.totalorder %s212, %s215
      %p224 = scmp.eq.s32.totalorder %s29, 1
      %p225 = por %p223, %p224
      %p226 = scmp.ne.s32.totalorder %s215, %s216
      %p227 = scmp.eq.s32.totalorder %s29, 0
      %p228 = por %p226, %p227
      %p229 = scmp.ne.s32.totalorder %s215, %s216
      %p230 = scmp.eq.s32.totalorder %s30, 1
      %p231 = por %p229, %p230
      %p233 = scmp.ne.s32.totalorder %s216, %s232
      %p234 = scmp.eq.s32.totalorder %s30, 0
      %p235 = por %p233, %p234
      %p236 = scmp.le.s32.totalorder 1, %s24
      %p237 = scmp.lt.s32.totalorder %s24, 3
      %p238 = pnand %p236, %p237
      %p239 = pneg %p238
      // Predicated region
      $region9: #{tpu_custom_call.1} parent=5 // pred_check
        _
      $region10: #{tpu_custom_call.1} parent=5 // pred_check_branch
        %241 = sbr.rel (%p238) target = $region12
      $region11: #{tpu_custom_call.1} parent=5 // pred_region
        %s242 = ssub.s32 %s24, 1
        // Predicated region
        $region13: #{tpu_custom_call.1} parent=11 // pred_check
          %p243 = pneg %p97
        $region14: #{tpu_custom_call.1} parent=11 // pred_check_branch
          %245 = sbr.rel (%p243) target = $region16
        $region15: #{tpu_custom_call.1} parent=11 // pred_region
          %s247 = ssub.s32 4096, 4096
          %248 = vsyncadd [#allocation6], %s247
          %s249 = sshll.u32 [#allocation7], 4
          %s250 = int_to_ptr.vmem [resolvable:$true] %s249
          %255 = dma.hbm_to_vmem [thread:$0]  %s2, 4096, %s250, [#allocation6], 256, 256, 16
        $region16: #{tpu_custom_call.1} parent=11 // pred_fallthru
          _
        // Predicated region
        $region17: #{tpu_custom_call.1} parent=11 // pred_check
          %p256 = pneg %p118
        $region18: #{tpu_custom_call.1} parent=11 // pred_check_branch
          %258 = sbr.rel (%p256) target = $region20
        $region19: #{tpu_custom_call.1} parent=11 // pred_region
          _
        $region20: #{tpu_custom_call.1} parent=11 // pred_fallthru
          _
        // Predicated region
        $region21: #{tpu_custom_call.1} parent=11 // pred_check
          %p259 = pneg %p139
        $region22: #{tpu_custom_call.1} parent=11 // pred_check_branch
          %261 = sbr.rel (%p259) target = $region24
        $region23: #{tpu_custom_call.1} parent=11 // pred_region
          %s263 = ssub.s32 8192, 8192
          %264 = vsyncadd [#allocation9], %s263
          %s265 = sshll.u32 [#allocation8], 4
          %s266 = int_to_ptr.vmem [resolvable:$true] %s265
          %271 = dma.hbm_to_vmem [thread:$0]  %s4, 8192, %s266, [#allocation9], 256, 256, 16
        $region24: #{tpu_custom_call.1} parent=11 // pred_fallthru
          _
        // Predicated region
        $region25: #{tpu_custom_call.1} parent=11 // pred_check
          %p272 = pneg %p160
        $region26: #{tpu_custom_call.1} parent=11 // pred_check_branch
          %274 = sbr.rel (%p272) target = $region28
        $region27: #{tpu_custom_call.1} parent=11 // pred_region
          _
        $region28: #{tpu_custom_call.1} parent=11 // pred_fallthru
          _
        // Predicated region
        $region29: #{tpu_custom_call.1} parent=11 // pred_check
          %p275 = pneg %p181
        $region30: #{tpu_custom_call.1} parent=11 // pred_check_branch
          %277 = sbr.rel (%p275) target = $region32
        $region31: #{tpu_custom_call.1} parent=11 // pred_region
          _
        $region32: #{tpu_custom_call.1} parent=11 // pred_fallthru
          _
        // Predicated region
        $region33: #{tpu_custom_call.1} parent=11 // pred_check
          %p278 = pneg %p202
        $region34: #{tpu_custom_call.1} parent=11 // pred_check_branch
          %280 = sbr.rel (%p278) target = $region36
        $region35: #{tpu_custom_call.1} parent=11 // pred_region
          _
        $region36: #{tpu_custom_call.1} parent=11 // pred_fallthru
          _
      $region12: #{tpu_custom_call.1} parent=5 // pred_fallthru
        _
      %p281 = scmp.lt.s32.totalorder %s24, 2
      // Predicated region
      $region37: #{tpu_custom_call.1} parent=5 // pred_check
        %p282 = pneg %p281
      $region38: #{tpu_custom_call.1} parent=5 // pred_check_branch
        %284 = sbr.rel (%p282) target = $region40
      $region39: #{tpu_custom_call.1} parent=5 // pred_region
        // Predicated region
        $region41: #{tpu_custom_call.1} parent=39 // pred_check
          %p285 = pneg %p44
        $region42: #{tpu_custom_call.1} parent=39 // pred_check_branch
          %287 = sbr.rel (%p285) target = $region44
        $region43: #{tpu_custom_call.1} parent=39 // pred_region
          %s288 = sand.u32 %s34, 1
          %s289 = scalar_lea.sflag [#allocation3], %s288
          %s290 = sand.u32 %s34, 1
          %s291 = smul.addr %s290, 8
          %s292 = scalar_lea.vmem [#allocation2], %s291
          %s294 = ssub.s32 128, 128
          %295 = vsyncadd %s289, %s294
          %s296 = smul.addr %s24, 128
          %s297 = scalar_lea.hbm %s0, %s296
          %s299 = sshll.u32 %s292, 4
          %s300 = int_to_ptr.vmem [resolvable:$true] %s299
          %302 = dma.hbm_to_vmem [thread:$0]  %s297, 128, %s300, %s289
        $region44: #{tpu_custom_call.1} parent=39 // pred_fallthru
          _
        // Predicated region
        $region45: #{tpu_custom_call.1} parent=39 // pred_check
          %p303 = pneg %p70
        $region46: #{tpu_custom_call.1} parent=39 // pred_check_branch
          %305 = sbr.rel (%p303) target = $region48
        $region47: #{tpu_custom_call.1} parent=39 // pred_region
          %s306 = sand.u32 %s24, 1
          %s307 = scalar_lea.sflag [#allocation6], %s306
          %s308 = sand.u32 %s60, 1
          %s309 = smul.addr %s308, 8
          %s310 = scalar_lea.vmem [#allocation5], %s309
          %s312 = ssub.s32 128, 128
          %313 = vsyncadd %s307, %s312
          %s314 = smul.addr %s24, 128
          %s315 = scalar_lea.hbm %s1, %s314
          %s317 = sshll.u32 %s310, 4
          %s318 = int_to_ptr.vmem [resolvable:$true] %s317
          %320 = dma.hbm_to_vmem [thread:$0]  %s315, 128, %s318, %s307
        $region48: #{tpu_custom_call.1} parent=39 // pred_fallthru
          _
      $region40: #{tpu_custom_call.1} parent=5 // pred_fallthru
        _
      %p321 = scmp.le.s32.totalorder 1, %s24
      %p322 = scmp.lt.s32.totalorder %s24, 3
      %p323 = pnand %p321, %p322
      %p324 = pneg %p323
      // Predicated region
      $region49: #{tpu_custom_call.1} parent=5 // pred_check
        _
      $region50: #{tpu_custom_call.1} parent=5 // pred_check_branch
        %326 = sbr.rel (%p323) target = $region52
      $region51: #{tpu_custom_call.1} parent=5 // pred_region
        %s327 = ssub.s32 %s24, 1
        %s328 = sand.u32 %s37, 1
        %s329 = scalar_lea.sflag [#allocation3], %s328
        %s330 = sand.u32 %s37, 1
        %s331 = smul.addr %s330, 8
        %s332 = scalar_lea.vmem [#allocation2], %s331
        // Predicated region
        $region53: #{tpu_custom_call.1} parent=51 // pred_check
          %p333 = pneg %p50
        $region54: #{tpu_custom_call.1} parent=51 // pred_check_branch
          %335 = sbr.rel (%p333) target = $region56
        $region55: #{tpu_custom_call.1} parent=51 // pred_region
          %336 = dma.done %s329, 128
        $region56: #{tpu_custom_call.1} parent=51 // pred_fallthru
          _
        %s337 = sand.u32 %s29, 1
        %s338 = scalar_lea.sflag [#allocation6], %s337
        %s339 = sand.u32 %s63, 1
        %s340 = smul.addr %s339, 8
        %s341 = scalar_lea.vmem [#allocation5], %s340
        // Predicated region
        $region57: #{tpu_custom_call.1} parent=51 // pred_check
          %p342 = pneg %p76
        $region58: #{tpu_custom_call.1} parent=51 // pred_check_branch
          %344 = sbr.rel (%p342) target = $region60
        $region59: #{tpu_custom_call.1} parent=51 // pred_region
          %345 = dma.done %s338, 128
        $region60: #{tpu_custom_call.1} parent=51 // pred_fallthru
          _
        // Predicated region
        $region61: #{tpu_custom_call.1} parent=51 // pred_check
          %p346 = pneg %p97
        $region62: #{tpu_custom_call.1} parent=51 // pred_check_branch
          %348 = sbr.rel (%p346) target = $region64
        $region63: #{tpu_custom_call.1} parent=51 // pred_region
          %349 = dma.done [#allocation6], 4096
        $region64: #{tpu_custom_call.1} parent=51 // pred_fallthru
          _
        // Predicated region
        $region65: #{tpu_custom_call.1} parent=51 // pred_check
          %p350 = pneg %p139
        $region66: #{tpu_custom_call.1} parent=51 // pred_check_branch
          %352 = sbr.rel (%p350) target = $region68
        $region67: #{tpu_custom_call.1} parent=51 // pred_region
          %353 = dma.done [#allocation9], 8192
        $region68: #{tpu_custom_call.1} parent=51 // pred_fallthru
          _
        %s354 = sand.u32 %s37, 1
        %s355 = scalar_lea.sflag [#allocation3], %s354
        %s356 = sand.u32 %s37, 1
        %s357 = smul.addr %s356, 8
        %s358 = scalar_lea.vmem [#allocation2], %s357
        %p359 = pneg %p50
        %p360 = pneg %p47
        %s361 = sand.u32 %s29, 1
        %s362 = scalar_lea.sflag [#allocation6], %s361
        %s363 = sand.u32 %s63, 1
        %s364 = smul.addr %s363, 8
        %s365 = scalar_lea.vmem [#allocation5], %s364
        %p366 = pneg %p76
        %p367 = pneg %p73
        %p368 = pneg %p97
        %p369 = pneg %p94
        %p370 = pneg %p118
        %p371 = pneg %p115
        %p372 = pneg %p139
        %p373 = pneg %p136
        %p374 = pneg %p160
        %p375 = pneg %p157
        %p376 = pneg %p181
        %p377 = pneg %p178
        %p378 = pneg %p202
        %p379 = pneg %p199
        %p380 = pneg %p228
        %p381 = pneg %p225
        %s382 = sand.u32 %s215, 1
        %s383 = scalar_lea.sflag [#allocation4], %s382
        %s384 = sand.u32 %s215, 1
        %s385 = smul.addr %s384, 8
        %s386 = scalar_lea.vmem [#allocation10], %s385
        %v387 = vld [vmem:[%s332] sm:$0xff]
        %v388 = vld [vmem:[%s341] sm:$0xff]
        %v389 = vld [vmem:[#allocation7] sm:$0xff]
        %v390 = vld [vmem:[#allocation7 + $0x8] sm:$0xff]
        %v391 = vld [vmem:[#allocation7 + $0x10] sm:$0xff]
        %v392 = vld [vmem:[#allocation7 + $0x18] sm:$0xff]
        %v393 = vld [vmem:[#allocation7 + $0x20] sm:$0xff]
        %v394 = vld [vmem:[#allocation7 + $0x28] sm:$0xff]
        %v395 = vld [vmem:[#allocation7 + $0x30] sm:$0xff]
        %v396 = vld [vmem:[#allocation7 + $0x38] sm:$0xff]
        %v397 = vld [vmem:[#allocation7 + $0x40] sm:$0xff]
        %v398 = vld [vmem:[#allocation7 + $0x48] sm:$0xff]
        %v399 = vld [vmem:[#allocation7 + $0x50] sm:$0xff]
        %v400 = vld [vmem:[#allocation7 + $0x58] sm:$0xff]
        %v401 = vld [vmem:[#allocation7 + $0x60] sm:$0xff]
        %v402 = vld [vmem:[#allocation7 + $0x68] sm:$0xff]
        %v403 = vld [vmem:[#allocation7 + $0x70] sm:$0xff]
        %v404 = vld [vmem:[#allocation7 + $0x78] sm:$0xff]
        %v405 = vld [vmem:[#allocation7 + $0x80] sm:$0xff]
        %v406 = vld [vmem:[#allocation7 + $0x88] sm:$0xff]
        %v407 = vld [vmem:[#allocation7 + $0x90] sm:$0xff]
        %v408 = vld [vmem:[#allocation7 + $0x98] sm:$0xff]
        %v409 = vld [vmem:[#allocation7 + $0xa0] sm:$0xff]
        %v410 = vld [vmem:[#allocation7 + $0xa8] sm:$0xff]
        %v411 = vld [vmem:[#allocation7 + $0xb0] sm:$0xff]
        %v412 = vld [vmem:[#allocation7 + $0xb8] sm:$0xff]
        %v413 = vld [vmem:[#allocation7 + $0xc0] sm:$0xff]
        %v414 = vld [vmem:[#allocation7 + $0xc8] sm:$0xff]
        %v415 = vld [vmem:[#allocation7 + $0xd0] sm:$0xff]
        %v416 = vld [vmem:[#allocation7 + $0xd8] sm:$0xff]
        %v417 = vld [vmem:[#allocation7 + $0xe0] sm:$0xff]
        %v418 = vld [vmem:[#allocation7 + $0xe8] sm:$0xff]
        %v419 = vld [vmem:[#allocation7 + $0xf0] sm:$0xff]
        %v420 = vld [vmem:[#allocation7 + $0xf8] sm:$0xff]
        %v421 = vld [vmem:[%s3] sm:$0x3]
        %v423 = vlaneseq
        %v424 = vshrl.u32 %v423, 7
        %v425 = vsub.s32 0, %v424
        %v426 = vrot.slane %v421, %v425
        %v427 = vlaneseq
        %v428 = vshrl.u32 %v427, 7
        %v429 = vsub.s32 1, %v428
        %v430 = vrot.slane %v421, %v429
        %433 = vmatprep.subr.mxu0 %v390
        %434 = vmatpush1.msra.mxu0 %v389
        %435 = vmatprep.subr.mxu0 %v392
        %436 = vmatpush1.msra.mxu0 %v391
        %437 = vmatprep.subr.mxu0 %v394
        %438 = vmatpush1.msra.mxu0 %v393
        %439 = vmatprep.subr.mxu0 %v396
        %440 = vmatpush1.msra.mxu0 %v395
        %441 = vmatprep.subr.mxu0 %v398
        %442 = vmatpush1.msra.mxu0 %v397
        %443 = vmatprep.subr.mxu0 %v400
        %444 = vmatpush1.msra.mxu0 %v399
        %445 = vmatprep.subr.mxu0 %v402
        %446 = vmatpush1.msra.mxu0 %v401
        %447 = vmatprep.subr.mxu0 %v404
        %448 = vmatpush1.msra.mxu0 %v403
        %449 = vmatprep.subr.mxu0 %v406
        %450 = vmatpush1.msra.mxu0 %v405
        %451 = vmatprep.subr.mxu0 %v408
        %452 = vmatpush1.msra.mxu0 %v407
        %453 = vmatprep.subr.mxu0 %v410
        %454 = vmatpush1.msra.mxu0 %v409
        %455 = vmatprep.subr.mxu0 %v412
        %456 = vmatpush1.msra.mxu0 %v411
        %457 = vmatprep.subr.mxu0 %v414
        %458 = vmatpush1.msra.mxu0 %v413
        %459 = vmatprep.subr.mxu0 %v416
        %460 = vmatpush1.msra.mxu0 %v415
        %461 = vmatprep.subr.mxu0 %v418
        %462 = vmatpush1.msra.mxu0 %v417
        %463 = vmatprep.subr.mxu0 %v420
        %464 = vmatpush1.msra.mxu0 %v419
        %465 = vmatprep.subr.mxu0 0.0
        %466 = vmatpush1.msra.mxu0 0.0
        %467 = vmatprep.subr.mxu0 0.0
        %468 = vmatpush1.msra.mxu0 0.0
        %469 = vmatprep.subr.mxu0 0.0
        %470 = vmatpush1.msra.mxu0 0.0
        %471 = vmatprep.subr.mxu0 0.0
        %472 = vmatpush1.msra.mxu0 0.0
        %473 = vmatprep.subr.mxu0 0.0
        %474 = vmatpush1.msra.mxu0 0.0
        %475 = vmatprep.subr.mxu0 0.0
        %476 = vmatpush1.msra.mxu0 0.0
        %477 = vmatprep.subr.mxu0 0.0
        %478 = vmatpush1.msra.mxu0 0.0
        %479 = vmatprep.subr.mxu0 0.0
        %480 = vmatpush1.msra.mxu0 0.0
        %481 = vmatprep.subr.mxu0 0.0
        %482 = vmatpush1.msra.mxu0 0.0
        %483 = vmatprep.subr.mxu0 0.0
        %484 = vmatpush1.msra.mxu0 0.0
        %485 = vmatprep.subr.mxu0 0.0
        %486 = vmatpush1.msra.mxu0 0.0
        %487 = vmatprep.subr.mxu0 0.0
        %488 = vmatpush1.msra.mxu0 0.0
        %489 = vmatprep.subr.mxu0 0.0
        %490 = vmatpush1.msra.mxu0 0.0
        %491 = vmatprep.subr.mxu0 0.0
        %492 = vmatpush1.msra.mxu0 0.0
        %493 = vmatprep.subr.mxu0 0.0
        %494 = vmatpush1.msra.mxu0 0.0
        %495 = vmatprep.subr.mxu0 0.0
        %496 = vmatpush1.msra.mxu0 0.0
        %497 = vmatprep.mubr.f32.mxu0 0.0
        %498 = vmatmul.mubr.f32.gmra.mrb[0].mxu0 %v388
        %v499 = vpop.f32.mrb[0].mxu0
        %v500 = vadd.f32 %v426, %v499
        %v501 = vpop.f32.mrb[0].mxu0
        %v502 = vadd.f32 %v430, %v501
        %503 = vdwg.mxu0
        %v504 = vmax.f32 %v500, 0.0
        %v505 = vmax.f32 %v502, 0.0
        %v506 = vld [vmem:[%s5] sm:$0x3]
        %v507 = vld [vmem:[#allocation8] sm:$0xff]
        %v508 = vld [vmem:[#allocation8 + $0x8] sm:$0xff]
        %v509 = vld [vmem:[#allocation8 + $0x10] sm:$0xff]
        %v510 = vld [vmem:[#allocation8 + $0x18] sm:$0xff]
        %v511 = vld [vmem:[#allocation8 + $0x20] sm:$0xff]
        %v512 = vld [vmem:[#allocation8 + $0x28] sm:$0xff]
        %v513 = vld [vmem:[#allocation8 + $0x30] sm:$0xff]
        %v514 = vld [vmem:[#allocation8 + $0x38] sm:$0xff]
        %v515 = vld [vmem:[#allocation8 + $0x40] sm:$0xff]
        %v516 = vld [vmem:[#allocation8 + $0x48] sm:$0xff]
        %v517 = vld [vmem:[#allocation8 + $0x50] sm:$0xff]
        %v518 = vld [vmem:[#allocation8 + $0x58] sm:$0xff]
        %v519 = vld [vmem:[#allocation8 + $0x60] sm:$0xff]
        %v520 = vld [vmem:[#allocation8 + $0x68] sm:$0xff]
        %v521 = vld [vmem:[#allocation8 + $0x70] sm:$0xff]
        %v522 = vld [vmem:[#allocation8 + $0x78] sm:$0xff]
        %v523 = vld [vmem:[#allocation8 + $0x80] sm:$0xff]
        %v524 = vld [vmem:[#allocation8 + $0x88] sm:$0xff]
        %v525 = vld [vmem:[#allocation8 + $0x90] sm:$0xff]
        %v526 = vld [vmem:[#allocation8 + $0x98] sm:$0xff]
        %v527 = vld [vmem:[#allocation8 + $0xa0] sm:$0xff]
        %v528 = vld [vmem:[#allocation8 + $0xa8] sm:$0xff]
        %v529 = vld [vmem:[#allocation8 + $0xb0] sm:$0xff]
        %v530 = vld [vmem:[#allocation8 + $0xb8] sm:$0xff]
        %v531 = vld [vmem:[#allocation8 + $0xc0] sm:$0xff]
        %v532 = vld [vmem:[#allocation8 + $0xc8] sm:$0xff]
        %v533 = vld [vmem:[#allocation8 + $0xd0] sm:$0xff]
        %v534 = vld [vmem:[#allocation8 + $0xd8] sm:$0xff]
        %v535 = vld [vmem:[#allocation8 + $0xe0] sm:$0xff]
        %v536 = vld [vmem:[#allocation8 + $0xe8] sm:$0xff]
        %v537 = vld [vmem:[#allocation8 + $0xf0] sm:$0xff]
        %v538 = vld [vmem:[#allocation8 + $0xf8] sm:$0xff]
        %v539 = vld [vmem:[#allocation8 + $0x100] sm:$0xff]
        %v540 = vld [vmem:[#allocation8 + $0x108] sm:$0xff]
        %v541 = vld [vmem:[#allocation8 + $0x110] sm:$0xff]
        %v542 = vld [vmem:[#allocation8 + $0x118] sm:$0xff]
        %v543 = vld [vmem:[#allocation8 + $0x120] sm:$0xff]
        %v544 = vld [vmem:[#allocation8 + $0x128] sm:$0xff]
        %v545 = vld [vmem:[#allocation8 + $0x130] sm:$0xff]
        %v546 = vld [vmem:[#allocation8 + $0x138] sm:$0xff]
        %v547 = vld [vmem:[#allocation8 + $0x140] sm:$0xff]
        %v548 = vld [vmem:[#allocation8 + $0x148] sm:$0xff]
        %v549 = vld [vmem:[#allocation8 + $0x150] sm:$0xff]
        %v550 = vld [vmem:[#allocation8 + $0x158] sm:$0xff]
        %v551 = vld [vmem:[#allocation8 + $0x160] sm:$0xff]
        %v552 = vld [vmem:[#allocation8 + $0x168] sm:$0xff]
        %v553 = vld [vmem:[#allocation8 + $0x170] sm:$0xff]
        %v554 = vld [vmem:[#allocation8 + $0x178] sm:$0xff]
        %v555 = vld [vmem:[#allocation8 + $0x180] sm:$0xff]
        %v556 = vld [vmem:[#allocation8 + $0x188] sm:$0xff]
        %v557 = vld [vmem:[#allocation8 + $0x190] sm:$0xff]
        %v558 = vld [vmem:[#allocation8 + $0x198] sm:$0xff]
        %v559 = vld [vmem:[#allocation8 + $0x1a0] sm:$0xff]
        %v560 = vld [vmem:[#allocation8 + $0x1a8] sm:$0xff]
        %v561 = vld [vmem:[#allocation8 + $0x1b0] sm:$0xff]
        %v562 = vld [vmem:[#allocation8 + $0x1b8] sm:$0xff]
        %v563 = vld [vmem:[#allocation8 + $0x1c0] sm:$0xff]
        %v564 = vld [vmem:[#allocation8 + $0x1c8] sm:$0xff]
        %v565 = vld [vmem:[#allocation8 + $0x1d0] sm:$0xff]
        %v566 = vld [vmem:[#allocation8 + $0x1d8] sm:$0xff]
        %v567 = vld [vmem:[#allocation8 + $0x1e0] sm:$0xff]
        %v568 = vld [vmem:[#allocation8 + $0x1e8] sm:$0xff]
        %v569 = vld [vmem:[#allocation8 + $0x1f0] sm:$0xff]
        %v570 = vld [vmem:[#allocation8 + $0x1f8] sm:$0xff]
        %v572 = vlaneseq
        %v573 = vshrl.u32 %v572, 7
        %v574 = vsub.s32 0, %v573
        %v575 = vrot.slane %v506, %v574
        %v576 = vlaneseq
        %v577 = vshrl.u32 %v576, 7
        %v578 = vsub.s32 1, %v577
        %v579 = vrot.slane %v506, %v578
        %582 = vmatprep.subr.mxu0 %v508
        %583 = vmatpush1.msra.mxu0 %v507
        %584 = vmatprep.subr.mxu0 %v510
        %585 = vmatpush1.msra.mxu0 %v509
        %586 = vmatprep.subr.mxu0 %v512
        %587 = vmatpush1.msra.mxu0 %v511
        %588 = vmatprep.subr.mxu0 %v514
        %589 = vmatpush1.msra.mxu0 %v513
        %590 = vmatprep.subr.mxu0 %v516
        %591 = vmatpush1.msra.mxu0 %v515
        %592 = vmatprep.subr.mxu0 %v518
        %593 = vmatpush1.msra.mxu0 %v517
        %594 = vmatprep.subr.mxu0 %v520
        %595 = vmatpush1.msra.mxu0 %v519
        %596 = vmatprep.subr.mxu0 %v522
        %597 = vmatpush1.msra.mxu0 %v521
        %598 = vmatprep.subr.mxu0 %v524
        %599 = vmatpush1.msra.mxu0 %v523
        %600 = vmatprep.subr.mxu0 %v526
        %601 = vmatpush1.msra.mxu0 %v525
        %602 = vmatprep.subr.mxu0 %v528
        %603 = vmatpush1.msra.mxu0 %v527
        %604 = vmatprep.subr.mxu0 %v530
        %605 = vmatpush1.msra.mxu0 %v529
        %606 = vmatprep.subr.mxu0 %v532
        %607 = vmatpush1.msra.mxu0 %v531
        %608 = vmatprep.subr.mxu0 %v534
        %609 = vmatpush1.msra.mxu0 %v533
        %610 = vmatprep.subr.mxu0 %v536
        %611 = vmatpush1.msra.mxu0 %v535
        %612 = vmatprep.subr.mxu0 %v538
        %613 = vmatpush1.msra.mxu0 %v537
        %614 = vmatprep.subr.mxu0 %v540
        %615 = vmatpush1.msra.mxu0 %v539
        %616 = vmatprep.subr.mxu0 %v542
        %617 = vmatpush1.msra.mxu0 %v541
        %618 = vmatprep.subr.mxu0 %v544
        %619 = vmatpush1.msra.mxu0 %v543
        %620 = vmatprep.subr.mxu0 %v546
        %621 = vmatpush1.msra.mxu0 %v545
        %622 = vmatprep.subr.mxu0 %v548
        %623 = vmatpush1.msra.mxu0 %v547
        %624 = vmatprep.subr.mxu0 %v550
        %625 = vmatpush1.msra.mxu0 %v549
        %626 = vmatprep.subr.mxu0 %v552
        %627 = vmatpush1.msra.mxu0 %v551
        %628 = vmatprep.subr.mxu0 %v554
        %629 = vmatpush1.msra.mxu0 %v553
        %630 = vmatprep.subr.mxu0 %v556
        %631 = vmatpush1.msra.mxu0 %v555
        %632 = vmatprep.subr.mxu0 %v558
        %633 = vmatpush1.msra.mxu0 %v557
        %634 = vmatprep.subr.mxu0 %v560
        %635 = vmatpush1.msra.mxu0 %v559
        %636 = vmatprep.subr.mxu0 %v562
        %637 = vmatpush1.msra.mxu0 %v561
        %638 = vmatprep.subr.mxu0 %v564
        %639 = vmatpush1.msra.mxu0 %v563
        %640 = vmatprep.subr.mxu0 %v566
        %641 = vmatpush1.msra.mxu0 %v565
        %642 = vmatprep.subr.mxu0 %v568
        %643 = vmatpush1.msra.mxu0 %v567
        %644 = vmatprep.subr.mxu0 %v570
        %645 = vmatpush1.msra.mxu0 %v569
        %646 = vmatprep.mubr.f32.mxu0 %v505
        %647 = vmatmul.mubr.f32.gmra.mrb[0].mxu0 %v504
        %v648 = vpop.f32.mrb[0].mxu0
        %v649 = vadd.f32 %v575, %v648
        %v650 = vpop.f32.mrb[0].mxu0
        %v651 = vadd.f32 %v579, %v650
        %652 = vdwg.mxu0
        %653 = vadd.xlane.f32.xlu0 %v387
        %v654 = vpop.xlane.xlu0 %653
        %v655 = vmul.f32 %v654, 0.03125
        %v656 = vsub.f32 %v387, %v655
        %v657 = vmul.f32 %v656, %v656
        %658 = vadd.xlane.f32.xlu0 %v657
        %v659 = vpop.xlane.xlu0 %658
        %v660 = vmul.f32 %v655, %v655
        %v661 = vmul.f32 %v660, 96.0
        %v662 = vsub.f32 %v659, %v661
        %v663 = vmax.f32 %v662, 0.0
        %v664 = vmul.f32 %v663, 0.032258064
        %v665 = vrsqrt.pop %v664
        %v666 = vmul.f32 %v664, %v665
        %vm667 = vcmp.eq.f32.partialorder %v664, inf
        %v668 = vsel %vm667, %v664, %v666
        %vm669 = vcmp.eq.f32.partialorder %v664, 0.0
        %v670 = vand.u32 %v664, 2147483648
        %v671 = vsel %vm669, %v670, %v668
        %v672 = vadd.f32 %v671, 1e-06
        %v673 = vrcp.pop %v672
        %v674 = vld [vmem:[%s6] sm:$0x1]
        %v676 = vlaneseq
        %v677 = vshrl.u32 %v676, 7
        %v678 = vsub.s32 0, %v677
        %v679 = vrot.slane %v674, %v678
        %v681 = vadd.f32 %v679, %v649
        %v682 = vld [vmem:[%s7] sm:$0x1]
        %v684 = vlaneseq
        %v685 = vshrl.u32 %v684, 7
        %v686 = vsub.s32 0, %v685
        %v687 = vrot.slane %v682, %v686
        %v689 = vadd.f32 %v687, %v651
        %v690 = vmul.f32 %v656, %v673
        %v691 = vmul.f32 %v681, %v690
        %v692 = vadd.f32 %v691, %v689
        %693 = vst [vmem:[%s386] sm:$0xff] %v692
        %s694 = sand.u32 %s215, 1
        %s695 = scalar_lea.sflag [#allocation4], %s694
        %s696 = sand.u32 %s215, 1
        %s697 = smul.addr %s696, 8
        %s698 = scalar_lea.vmem [#allocation10], %s697
        // Predicated region
        $region69: #{tpu_custom_call.1} parent=51 // pred_check
          %p699 = pneg %p225
        $region70: #{tpu_custom_call.1} parent=51 // pred_check_branch
          %701 = sbr.rel (%p699) target = $region72
        $region71: #{tpu_custom_call.1} parent=51 // pred_region
          %s703 = ssub.s32 128, 128
          %704 = vsyncadd %s695, %s703
          %s705 = smul.addr %s29, 128
          %s706 = scalar_lea.hbm %s8, %s705
          %s708 = sshll.u32 %s698, 4
          %s709 = int_to_ptr.vmem [resolvable:$true] %s708
          %711 = dma.vmem_to_hbm [thread:$0]  %s709, 128, %s706, %s695
        $region72: #{tpu_custom_call.1} parent=51 // pred_fallthru
          _
      $region52: #{tpu_custom_call.1} parent=5 // pred_fallthru
        _
      %p712 = scmp.le.s32.totalorder 2, %s24
      // Predicated region
      $region73: #{tpu_custom_call.1} parent=5 // pred_check
        %p713 = pneg %p712
      $region74: #{tpu_custom_call.1} parent=5 // pred_check_branch
        %715 = sbr.rel (%p713) target = $region76
      $region75: #{tpu_custom_call.1} parent=5 // pred_region
        %s716 = ssub.s32 %s24, 2
        // Predicated region
        $region77: #{tpu_custom_call.1} parent=75 // pred_check
          %p717 = pneg %p231
        $region78: #{tpu_custom_call.1} parent=75 // pred_check_branch
          %719 = sbr.rel (%p717) target = $region80
        $region79: #{tpu_custom_call.1} parent=75 // pred_region
          %s720 = sand.u32 %s216, 1
          %s721 = scalar_lea.sflag [#allocation4], %s720
          %s722 = sand.u32 %s216, 1
          %s723 = smul.addr %s722, 8
          %s724 = scalar_lea.vmem [#allocation10], %s723
          %725 = dma.done %s721, 128
        $region80: #{tpu_custom_call.1} parent=75 // pred_fallthru
          _
      $region76: #{tpu_custom_call.1} parent=5 // pred_fallthru
        _
    $region6: #{tpu_custom_call.1} parent=1 // loop_footer
      %s28 = sadd.s32 1, %s24
    $region7: #{tpu_custom_call.1} parent=1 // loop_footer_branch
      %23 = sbr.rel target = $region3
    $region8: #{tpu_custom_call.1} parent=1 // loop_exit
      _
    %726 = vsyncpa [#allocation3], 1
    %s727 = scalar_lea.sflag [#allocation3], 1
    %728 = vsyncpa %s727, 1
    %729 = vsyncpa [#allocation6], 1
    %s730 = scalar_lea.sflag [#allocation6], 1
    %731 = vsyncpa %s730, 1
    %732 = vsyncpa [#allocation9], 1
    %733 = vsyncpa [#allocation4], 1
    %s734 = scalar_lea.sflag [#allocation4], 1
    %735 = vsyncpa %s734, 1

</llo_original>
